<compile_context>
chip_gen: v5e
topology: v5e:2x2
jax: 0.10.0
libtpu: 0.0.40
codegen_flags: <defaults>
</compile_context>

<pallas_src>
import math

import jax
import jax.numpy as jnp
import numpy as np
from jax.experimental import pallas as pl
from jax.experimental.pallas import tpu as pltpu


# ----------------------------------------------------------------------------
# Single fused cell step (exactly the module's forward(x, h) -> (o, h_new)).
# ----------------------------------------------------------------------------
def _rnn_cell_kernel(xh_ref, w_ih_ref, b_h_ref, w_ho_ref, b_o_ref, out_ref):
    """One fused RNN cell step for a (block_b, D+H) batch tile.

    out_ref is a single lane-dense slab: [:, :O] = o, [:, O:] = h_new.
    """
    xh = xh_ref[...].astype(jnp.float32)                               # (b, D+H)

    # i2h(x) + h2h(h) + bias as ONE MXU matmul ([x||h] @ [Wi; Wh]).
    pre = (jnp.dot(xh, w_ih_ref[...], preferred_element_type=jnp.float32)
           + b_h_ref[...])                                             # (b, H)
    h_new = jnp.tanh(pre)                                              # (b, H)

    # h2o
    o = (jnp.dot(h_new, w_ho_ref[...], preferred_element_type=jnp.float32)
         + b_o_ref[...])                                               # (b, O)

    # One merged store instead of two lane-sparse ones.
    out_ref[...] = jnp.concatenate([o, h_new], axis=-1).astype(out_ref.dtype)


def rnn_cell_forward(x, h, params, *, block_b=None):
    """x: (B, D), h: (B, H) -> (o: (B, O), h_new: (B, H)). Matches RNN.forward."""
    B, D = x.shape
    H = h.shape[1]
    O = params["bo"].shape[1]

    # Concatenate activations in the wrapper (not in-kernel) so the kernel sees a
    # single K=D+H operand.
    xh = jnp.concatenate([x, h], axis=-1)                              # (B, D+H)

    if block_b is None:
        # Split the batch across the two v7x TensorCores only when B is large
        # enough to amortize per-grid-step overhead; one tile otherwise
        # (v5e/v6e have a single TC — splitting would be pure overhead).
        block_b = B // 2 if (B >= 512 and B % 2 == 0) else B
    assert B % block_b == 0, "block_b must divide batch"
    grid = (B // block_b,)

    def row_spec(ncols):
        return pl.BlockSpec((block_b, ncols), lambda i: (i, 0))

    def const_spec(arr):
        # Weights / biases: same block for every batch tile -> stay VMEM-resident.
        return pl.BlockSpec(arr.shape, lambda i: (0, 0))

    slab = pl.pallas_call(
        _rnn_cell_kernel,
        out_shape=jax.ShapeDtypeStruct((B, O + H), jnp.float32),
        grid=grid,
        in_specs=[
            row_spec(D + H),               # [x || h]
            const_spec(params["w_ih"]),    # stacked [Wi; Wh]  (D+H, H)
            const_spec(params["bh"]),      # h2h bias          (1, H)
            const_spec(params["wo"]),      # h2o weight        (H, O)
            const_spec(params["bo"]),      # h2o bias          (1, O)
        ],
        out_specs=row_spec(O + H),
        compiler_params=pltpu.CompilerParams(
            dimension_semantics=("parallel",),   # batch tiles are independent
        ),
    )(xh, params["w_ih"], params["bh"], params["wo"], params["bo"])

    return slab[:, :O], slab[:, O:]


# ----------------------------------------------------------------------------
# Whole-sequence kernel: time axis inside the pallas_call (review item #1).
# Semantically identical to calling forward() T times with h fed back.
# ----------------------------------------------------------------------------
def _rnn_seq_kernel(x_ref, h0_ref, wi_ref, wh_ref, bh_ref, wo_ref, bo_ref,
                    o_ref, h_out_ref, h_scratch):
    t = pl.program_id(0)

    @pl.when(t == 0)
    def _():
        h_scratch[...] = h0_ref[...]

    h = h_scratch[...]                                                  # (B, H)
    x = x_ref[0]                                                        # (B, D)

    pre = (jnp.dot(x, wi_ref[...], preferred_element_type=jnp.float32)
           + jnp.dot(h, wh_ref[...], preferred_element_type=jnp.float32)
           + bh_ref[...])
    h_new = jnp.tanh(pre)                                               # (B, H)
    h_scratch[...] = h_new

    o_ref[0] = (jnp.dot(h_new, wo_ref[...], preferred_element_type=jnp.float32)
                + bo_ref[...]).astype(o_ref.dtype)                      # (B, O)

    @pl.when(t == pl.num_programs(0) - 1)
    def _():
        h_out_ref[...] = h_new.astype(h_out_ref.dtype)


def rnn_seq_forward(xs, h0, params):
    """xs: (T, B, D), h0: (B, H) -> (os: (T, B, O), h_T: (B, H)).

    One kernel launch for the whole sequence; weights DMA'd to VMEM once
    (constant index maps) and h carried in VMEM scratch — no per-step HBM
    round-trips for h and no per-step launch overhead.
    """
    T, B, D = xs.shape
    H = h0.shape[1]
    O = params["bo"].shape[1]

    def const_spec(arr):
        return pl.BlockSpec(arr.shape, lambda t: (0,) * arr.ndim)

    os, h_final = pl.pallas_call(
        _rnn_seq_kernel,
        out_shape=(jax.ShapeDtypeStruct((T, B, O), jnp.float32),
                   jax.ShapeDtypeStruct((B, H), jnp.float32)),
        grid=(T,),
        in_specs=[
            pl.BlockSpec((1, B, D), lambda t: (t, 0, 0)),   # x_t
            const_spec(h0),                                 # h0 (read at t==0)
            const_spec(params["wi"]),                       # (D, H)
            const_spec(params["wh"]),                       # (H, H)
            const_spec(params["bh"]),                       # (1, H)
            const_spec(params["wo"]),                       # (H, O)
            const_spec(params["bo"]),                       # (1, O)
        ],
        out_specs=(
            pl.BlockSpec((1, B, O), lambda t: (t, 0, 0)),   # o_t
            pl.BlockSpec((B, H), lambda t: (0, 0)),         # h_T (written at last t)
        ),
        scratch_shapes=[pltpu.VMEM((B, H), jnp.float32)],   # recurrent carry
        compiler_params=pltpu.CompilerParams(
            dimension_semantics=("arbitrary",),             # time steps are a carry chain
        ),
    )(xs, h0, params["wi"], params["wh"], params["bh"], params["wo"], params["bo"])
    return os, h_final


# ----------------------------------------------------------------------------
# Params & reference
# ----------------------------------------------------------------------------
def init_params(key, input_size, hidden_size, output_size):
    """PyTorch nn.Linear-style uniform(-1/sqrt(fan_in), 1/sqrt(fan_in)) init.

    Weights stored (in, out) — transpose of torch's (out, in) — so kernels compute
    x @ W directly (values are synthetic; purely a layout choice). `w_ih` is the
    pre-stacked [Wi; Wh] used by the fused single-step kernel.
    """
    k1, k2, k3, k4, k5 = jax.random.split(key, 5)
    bi = 1.0 / math.sqrt(input_size)
    bh = 1.0 / math.sqrt(hidden_size)
    wi = jax.random.uniform(k1, (input_size, hidden_size), jnp.float32, -bi, bi)
    wh = jax.random.uniform(k2, (hidden_size, hidden_size), jnp.float32, -bh, bh)
    params = {
        "wi": wi,
        "wh": wh,
        "w_ih": jnp.concatenate([wi, wh], axis=0),          # (D+H, H)
        "bh": jax.random.uniform(k3, (1, hidden_size), jnp.float32, -bh, bh),
        "wo": jax.random.uniform(k4, (hidden_size, output_size), jnp.float32, -bh, bh),
        "bo": jax.random.uniform(k5, (1, output_size), jnp.float32, -bh, bh),
    }
    return params


def rnn_cell_reference(x, h, params):
    """Pure-JAX replica of the PyTorch forward."""
    h_new = jnp.tanh(x @ params["wi"] + h @ params["wh"] + params["bh"])
    o = h_new @ params["wo"] + params["bo"]
    return o, h_new


if __name__ == "__main__":
    batch, input_size, hidden_size, output_size = 4, 16, 32, 8
    seq_len = 6

    key = jax.random.PRNGKey(0)
    kp, kx, kxs = jax.random.split(key, 3)
    params = init_params(kp, input_size, hidden_size, output_size)

    # h0 = RNN.initialize(batch)
    h0 = jnp.zeros((batch, hidden_size), jnp.float32)

    # --- 1) single fused step: matches RNN.forward(x, h) exactly ---------------
    x = jax.random.normal(kx, (batch, input_size), jnp.float32)
    o, h1 = rnn_cell_forward(x, h0, params)
    o = jax.block_until_ready(o)
    h1 = jax.block_until_ready(h1)
    ref_o, ref_h1 = rnn_cell_reference(x, h0, params)
    np.testing.assert_allclose(np.asarray(o), np.asarray(ref_o), rtol=1e-5, atol=1e-5)
    np.testing.assert_allclose(np.asarray(h1), np.asarray(ref_h1), rtol=1e-5, atol=1e-5)

    # --- 2) whole sequence in one kernel (time loop inside, weights resident) --
    xs = jax.random.normal(kxs, (seq_len, batch, input_size), jnp.float32)
    os, h_T = rnn_seq_forward(xs, h0, params)
    os = jax.block_until_ready(os)
    h_T = jax.block_until_ready(h_T)

    ref_h = h0
    ref_os = []
    for t in range(seq_len):
        ro, ref_h = rnn_cell_reference(xs[t], ref_h, params)
        ref_os.append(ro)
    ref_os = jnp.stack(ref_os, axis=0)
    np.testing.assert_allclose(np.asarray(os), np.asarray(ref_os), rtol=1e-5, atol=1e-5)
    np.testing.assert_allclose(np.asarray(h_T), np.asarray(ref_h), rtol=1e-5, atol=1e-5)

    print("KERNEL_OK")
</pallas_src>

<mosaic_0001>
module attributes {stable_mosaic.version = 11 : i64} {
  func.func @_rnn_cell_kernel(%arg0: i32, %arg1: memref<4x48xf32, #tpu.memory_space<vmem>>, %arg2: memref<48x32xf32, #tpu.memory_space<vmem>>, %arg3: memref<1x32xf32, #tpu.memory_space<vmem>>, %arg4: memref<32x8xf32, #tpu.memory_space<vmem>>, %arg5: memref<1x8xf32, #tpu.memory_space<vmem>>, %arg6: memref<4x40xf32, #tpu.memory_space<vmem>>) attributes {dimension_semantics = [#tpu.dimension_semantics<parallel>], iteration_bounds = array<i64: 1>, scalar_prefetch = 0 : i64, scratch_operands = 0 : i64, tpu.core_type = #tpu.core_type<tc>, window_params = [{transform_indices = @transform_0, window_bounds = array<i64: 4, 48>}, {pipeline_mode = #tpu.pipeline_mode<synchronous>, transform_indices = @transform_1, window_bounds = array<i64: 48, 32>}, {pipeline_mode = #tpu.pipeline_mode<synchronous>, transform_indices = @transform_2, window_bounds = array<i64: 1, 32>}, {pipeline_mode = #tpu.pipeline_mode<synchronous>, transform_indices = @transform_3, window_bounds = array<i64: 32, 8>}, {pipeline_mode = #tpu.pipeline_mode<synchronous>, transform_indices = @transform_4, window_bounds = array<i64: 1, 8>}, {transform_indices = @transform_5, window_bounds = array<i64: 4, 40>}]} {
    %c0 = arith.constant 0 : index
    %c0_0 = arith.constant 0 : index
    %0 = vector.load %arg1[%c0, %c0_0] : memref<4x48xf32, #tpu.memory_space<vmem>>, vector<4x48xf32>
    %c0_1 = arith.constant 0 : index
    %c0_2 = arith.constant 0 : index
    %1 = vector.load %arg2[%c0_1, %c0_2] : memref<48x32xf32, #tpu.memory_space<vmem>>, vector<48x32xf32>
    %cst = arith.constant dense<0.000000e+00> : vector<4x32xf32>
    %2 = tpu.matmul %0, %1, %cst {dimension_numbers = #tpu.dot_dimension_numbers<[1], [0], [0], [1], [0, 0, 1, 1], [], []>} : vector<4x48xf32>, vector<48x32xf32>, vector<4x32xf32> -> vector<4x32xf32>
    %c0_3 = arith.constant 0 : index
    %c0_4 = arith.constant 0 : index
    %3 = vector.load %arg3[%c0_3, %c0_4] : memref<1x32xf32, #tpu.memory_space<vmem>>, vector<1x32xf32>
    %4 = vector.broadcast %3 : vector<1x32xf32> to vector<4x32xf32>
    %5 = arith.addf %2, %4 : vector<4x32xf32>
    %6 = math.tanh %5 : vector<4x32xf32>
    %c0_5 = arith.constant 0 : index
    %c0_6 = arith.constant 0 : index
    %7 = vector.load %arg4[%c0_5, %c0_6] : memref<32x8xf32, #tpu.memory_space<vmem>>, vector<32x8xf32>
    %cst_7 = arith.constant dense<0.000000e+00> : vector<4x8xf32>
    %8 = tpu.matmul %6, %7, %cst_7 {dimension_numbers = #tpu.dot_dimension_numbers<[1], [0], [0], [1], [0, 0, 1, 1], [], []>} : vector<4x32xf32>, vector<32x8xf32>, vector<4x8xf32> -> vector<4x8xf32>
    %c0_8 = arith.constant 0 : index
    %c0_9 = arith.constant 0 : index
    %9 = vector.load %arg5[%c0_8, %c0_9] : memref<1x8xf32, #tpu.memory_space<vmem>>, vector<1x8xf32>
    %10 = vector.broadcast %9 : vector<1x8xf32> to vector<4x8xf32>
    %11 = arith.addf %8, %10 : vector<4x8xf32>
    %12 = tpu.concatenate %11, %6 in 1 : vector<4x8xf32>, vector<4x32xf32> -> vector<4x40xf32>
    %c0_10 = arith.constant 0 : index
    %c0_11 = arith.constant 0 : index
    %13 = vector.load %arg6[%c0_10, %c0_11] : memref<4x40xf32, #tpu.memory_space<vmem>>, vector<4x40xf32>
    tpu.vector_store %arg6[%c0_10, %c0_11], %12 {strides = array<i32>} : memref<4x40xf32, #tpu.memory_space<vmem>>, vector<4x40xf32>,
    return
  }
  func.func @transform_0(%arg0: i32) -> (i32, i32) {
    %c0_i32 = arith.constant 0 : i32
    %c0_i32_0 = arith.constant 0 : i32
    return %arg0, %c0_i32 : i32, i32
  }
  func.func @transform_1(%arg0: i32) -> (i32, i32) {
    %c0_i32 = arith.constant 0 : i32
    %c0_i32_0 = arith.constant 0 : i32
    %c0_i32_1 = arith.constant 0 : i32
    return %c0_i32, %c0_i32_0 : i32, i32
  }
  func.func @transform_2(%arg0: i32) -> (i32, i32) {
    %c0_i32 = arith.constant 0 : i32
    %c0_i32_0 = arith.constant 0 : i32
    %c0_i32_1 = arith.constant 0 : i32
    return %c0_i32, %c0_i32_0 : i32, i32
  }
  func.func @transform_3(%arg0: i32) -> (i32, i32) {
    %c0_i32 = arith.constant 0 : i32
    %c0_i32_0 = arith.constant 0 : i32
    %c0_i32_1 = arith.constant 0 : i32
    return %c0_i32, %c0_i32_0 : i32, i32
  }
  func.func @transform_4(%arg0: i32) -> (i32, i32) {
    %c0_i32 = arith.constant 0 : i32
    %c0_i32_0 = arith.constant 0 : i32
    %c0_i32_1 = arith.constant 0 : i32
    return %c0_i32, %c0_i32_0 : i32, i32
  }
  func.func @transform_5(%arg0: i32) -> (i32, i32) {
    %c0_i32 = arith.constant 0 : i32
    %c0_i32_0 = arith.constant 0 : i32
    return %arg0, %c0_i32 : i32, i32
  }
}

</mosaic_0001>

<llo_original>
// kernel: tpu_custom_call.1
$region0: #{tpu_custom_call.1}
  #allocation0 [shape = 'u32[]', space=smem, size = 0x4, offset = 0x4, fixed_abs, tag = 'smem constant byte address 0x4 - core index']
  #allocation1 [shape = 'u32[72,128]{1,0:T(1,128)}', space=vmem, size = 0x9000, scoped, tag = 'internal scratch']
  %s0 = inlined_call_operand.vmem [shape: f32[4,48], index: 0, kind: input, shape index: {}]
  %s1 = inlined_call_operand.vmem [shape: f32[48,32], index: 1, kind: input, shape index: {}]
  %s2 = inlined_call_operand.vmem [shape: f32[1,32], index: 2, kind: input, shape index: {}]
  %s3 = inlined_call_operand.vmem [shape: f32[32,8], index: 3, kind: input, shape index: {}]
  %s4 = inlined_call_operand.vmem [shape: f32[1,8], index: 4, kind: input, shape index: {}]
  %s5 = inlined_call_operand.hbm [shape: f32[4,40], index: 5, kind: output, shape index: {}]
  %s6 = sld [smem:[#allocation0]]
  $region30: #{tpu_custom_call.1} parent=0
    _
  %s8 = ssub.s32 1, %s6
  %s9 = scalar_select 0, %s8, %s6
  $region1: #{tpu_custom_call.1} parent=0
    #allocation2 [shape = 'u8[2048]{0}', space=vmem, size = 0x800, scoped, tag = 'output window, operand 0, single buffered']
    #allocation3 [shape = 's32[1]{0}', space=sflag, size = 0x4, scoped, tag = 'scoped memory for tpu_custom_call.1']
    %10 = vsyncpa [#allocation3], 0
    // Predicated region
    $region2: #{tpu_custom_call.1} parent=1 // pred_check
      _
    $region3: #{tpu_custom_call.1} parent=1 // pred_check_branch
      %12 = sbr.rel (0) target = $region5
    $region4: #{tpu_custom_call.1} parent=1 // pred_region
      _
    $region5: #{tpu_custom_call.1} parent=1 // pred_fallthru
      _
    // Predicated region
    $region6: #{tpu_custom_call.1} parent=1 // pred_check
      _
    $region7: #{tpu_custom_call.1} parent=1 // pred_check_branch
      %14 = sbr.rel (0) target = $region9
    $region8: #{tpu_custom_call.1} parent=1 // pred_region
      _
    $region9: #{tpu_custom_call.1} parent=1 // pred_fallthru
      _
    // Predicated region
    $region10: #{tpu_custom_call.1} parent=1 // pred_check
      _
    $region11: #{tpu_custom_call.1} parent=1 // pred_check_branch
      %16 = sbr.rel (0) target = $region13
    $region12: #{tpu_custom_call.1} parent=1 // pred_region
      _
    $region13: #{tpu_custom_call.1} parent=1 // pred_fallthru
      _
    // Predicated region
    $region14: #{tpu_custom_call.1} parent=1 // pred_check
      _
    $region15: #{tpu_custom_call.1} parent=1 // pred_check_branch
      %18 = sbr.rel (0) target = $region17
    $region16: #{tpu_custom_call.1} parent=1 // pred_region
      _
    $region17: #{tpu_custom_call.1} parent=1 // pred_fallthru
      _
    // Predicated region
    $region18: #{tpu_custom_call.1} parent=1 // pred_check
      _
    $region19: #{tpu_custom_call.1} parent=1 // pred_check_branch
      %20 = sbr.rel (0) target = $region21
    $region20: #{tpu_custom_call.1} parent=1 // pred_region
      _
    $region21: #{tpu_custom_call.1} parent=1 // pred_fallthru
      _
    %v21 = vld [vmem:[%s0] sm:$0xf]
    %v22 = vld [vmem:[%s1] sm:$0xff]
    %v23 = vld [vmem:[%s1 + $0x8] sm:$0xff]
    %v24 = vld [vmem:[%s1 + $0x10] sm:$0xff]
    %v25 = vld [vmem:[%s1 + $0x18] sm:$0xff]
    %v26 = vld [vmem:[%s1 + $0x20] sm:$0xff]
    %v27 = vld [vmem:[%s1 + $0x28] sm:$0xff]
    %v28 = vld [vmem:[%s2] sm:$0x1]
    %v30 = vperm.slane %v28, 0
    %vm32 = vcmask 392192
    %v34 = vsel %vm32, %v21, 0
    %36 = vmatpush.msra.mxu0 0.0
    %37 = vmatpush.msra.mxu0 0.0
    %38 = vmatpush.msra.mxu0 0.0
    %39 = vmatpush.msra.mxu0 0.0
    %40 = vmatpush.msra.mxu0 0.0
    %41 = vmatpush.msra.mxu0 0.0
    %42 = vmatpush.msra.mxu0 0.0
    %43 = vmatpush.msra.mxu0 0.0
    %44 = vmatpush.msra.mxu0 0.0
    %45 = vmatpush.msra.mxu0 0.0
    %46 = vmatpush.msra.mxu0 %v27
    %47 = vmatpush.msra.mxu0 %v26
    %48 = vmatpush.msra.mxu0 %v25
    %49 = vmatpush.msra.mxu0 %v24
    %50 = vmatpush.msra.mxu0 %v23
    %51 = vmatpush.msra.mxu0 %v22
    %52 = vmatmul.f32.gmra.mxu0 %v34
    %v53 = vpop.f32.mrf.mxu0
    %v54 = vadd.f32 %v30, %v53
    %55 = vdwg.mxu0
    %v56 = vtanh.pop %v54
    %v57 = vld [vmem:[%s3] sm:$0xff]
    %v58 = vld [vmem:[%s3 + $0x8] sm:$0xff]
    %v59 = vld [vmem:[%s3 + $0x10] sm:$0xff]
    %v60 = vld [vmem:[%s3 + $0x18] sm:$0xff]
    %v61 = vld [vmem:[%s4] sm:$0x1]
    %v63 = vperm.slane %v61, 0
    %vm65 = vcmask 261120
    %v67 = vsel %vm65, %v56, 0
    %69 = vmatpush.msra.mxu0 0.0
    %70 = vmatpush.msra.mxu0 0.0
    %71 = vmatpush.msra.mxu0 0.0
    %72 = vmatpush.msra.mxu0 0.0
    %73 = vmatpush.msra.mxu0 0.0
    %74 = vmatpush.msra.mxu0 0.0
    %75 = vmatpush.msra.mxu0 0.0
    %76 = vmatpush.msra.mxu0 0.0
    %77 = vmatpush.msra.mxu0 0.0
    %78 = vmatpush.msra.mxu0 0.0
    %79 = vmatpush.msra.mxu0 0.0
    %80 = vmatpush.msra.mxu0 0.0
    %81 = vmatpush.msra.mxu0 %v60
    %82 = vmatpush.msra.mxu0 %v59
    %83 = vmatpush.msra.mxu0 %v58
    %84 = vmatpush.msra.mxu0 %v57
    %85 = vmatmul.f32.gmra.mxu0 %v67
    %v86 = vpop.f32.mrf.mxu0
    %v87 = vadd.f32 %v63, %v86
    %88 = vdwg.mxu0
    %89 = vrot.lane.b32.xlu0 %v56, 8
    %v90 = vpop.permute.xlu0 %89
    %vm92 = vcmask 64512
    %v93 = vsel %vm92, %v87, %v90
    %vm94 = vcmask 322560
    %95 = vst.msk [vmem:[#allocation2] sm:$0xf] %vm94, %v93
    // Predicated region
    $region22: #{tpu_custom_call.1} parent=1 // pred_check
      _
    $region23: #{tpu_custom_call.1} parent=1 // pred_check_branch
      %97 = sbr.rel (0) target = $region25
    $region24: #{tpu_custom_call.1} parent=1 // pred_region
      %99 = vsyncadd [#allocation3], 0
      %s101 = sshll.u32 [#allocation2], 4
      %s102 = int_to_ptr.vmem [resolvable:$true] %s101
      %s103 = sshll.u32 %s5, 4
      %s104 = int_to_ptr.hbm [resolvable:$true] %s103
      %106 = dma.vmem_to_hbm [thread:$0]  %s102, 64, %s104, [#allocation3]
    $region25: #{tpu_custom_call.1} parent=1 // pred_fallthru
      _
    // Predicated region
    $region26: #{tpu_custom_call.1} parent=1 // pred_check
      _
    $region27: #{tpu_custom_call.1} parent=1 // pred_check_branch
      %108 = sbr.rel (0) target = $region29
    $region28: #{tpu_custom_call.1} parent=1 // pred_region
      %110 = dma.done [#allocation3], 64
    $region29: #{tpu_custom_call.1} parent=1 // pred_fallthru
      _
    %111 = vsyncpa [#allocation3], 1

</llo_original>
